<compile_context>
chip_gen: v5e
topology: v5e:2x2
jax: 0.10.0
libtpu: 0.0.40
codegen_flags: <defaults>
</compile_context>

<pallas_src>
import functools

import jax
import jax.numpy as jnp
from jax.experimental import pallas as pl
from jax.experimental.pallas import tpu as pltpu


def _round_up(v, m):
    return ((v + m - 1) // m) * m


_SUBLANE_F32 = 8                      # f32 sublane granule for row-tile blocks
_B_VMEM_BUDGET = 24 * 1024 * 1024     # cap for the double-buffered B column slab


# ----------------------------- Pallas kernel --------------------------------

def _static_freq_kernel(x_ref, b_ref, o_ref):
    """out_tile = x_tile @ B_all[:, col_tile]  (all experts folded into columns).

    x_ref : (TM, L)  f32   input rows (one row = one (batch, channel) series);
                           cast to the B dtype in-kernel instead of a separate
                           wrapper-side HBM cast pass.
    b_ref : (L, TN)  bf16  folded circular-filter slab (experts along columns,
                           zero-padded to a 128 lane multiple).
    o_ref : (TM, TN) f32   filtered rows for all experts (lane-dense).
    """
    x = x_ref[...].astype(b_ref.dtype)
    o_ref[...] = jnp.dot(
        x, b_ref[...], preferred_element_type=jnp.float32
    ).astype(o_ref.dtype)


# --------------------------- parameter folding -------------------------------

def fold_freq_weight(freq_w, input_len, *, lane_align=128, dtype=jnp.bfloat16):
    """Fold irfft(rfft(.) * w, n=L) into one dense (L, NP) matrix, all experts.

    freq_w : (E, L//2 + 1) real frequency weights (the nn.Parameter squeezed).
    Returns B_all : (L, NP), NP = round_up(E*L, lane_align), such that
        filter_e(x_row) == x_row @ B_all[:, e*L:(e+1)*L].
    Experts live along the matmul N dim so the hot path is one matmul per row
    tile and the output is lane-dense.  Stored directly in the compute dtype
    (default bf16 — keep float32 if the production-L error budget is tight)
    so the forward pass has no per-call weight cast.  Runs once at parameter
    setup time, outside the jitted forward.  Use lane_align=256 to also fill
    full v6e/v7x MXU column passes when E*L is not 256-aligned.
    """
    E, FL = freq_w.shape
    L = input_len
    assert FL == L // 2 + 1
    eye = jnp.eye(L, dtype=jnp.float32)
    basis_f = jnp.fft.rfft(eye, axis=-1)                                # (L, FL)
    B = jnp.fft.irfft(basis_f[None, :, :] * freq_w[:, None, :],
                      n=L, axis=-1)                                     # (E, L, L)
    B_all = jnp.transpose(B, (1, 0, 2)).reshape(L, E * L)               # (L, E*L)
    NP = _round_up(E * L, lane_align)
    if NP != E * L:
        B_all = jnp.pad(B_all, ((0, 0), (0, NP - E * L)))
    return B_all.astype(dtype)


# ------------------------------ forward wrapper -------------------------------

@functools.partial(
    jax.jit,
    static_argnames=("num_experts", "tile_rows", "col_tile", "out_dtype"))
def static_freq_forward(x, B_all, *, num_experts, tile_rows=512, col_tile=None,
                        out_dtype=jnp.float32):
    """x: (N, 1, C, L) f32, B_all from fold_freq_weight  ->  (N, E, C, L).

    Matches StaticFreqWeight.forward(x) with rank_experts=None, windowing=False
    (the (1, E, 1, FL) weight broadcasts the single input expert dim to E).
    Set out_dtype=jnp.bfloat16 if the consumer tolerates it (halves writeback
    bytes / store-slot pressure — biggest win on v5e).
    """
    N, E_in, C, L = x.shape
    assert E_in == 1      # TODO(synk): per-sample rank_experts routing not modeled
    E = num_experts
    NP = B_all.shape[1]
    assert B_all.shape[0] == L and NP >= E * L and NP % 128 == 0

    M = N * C
    # L is already the minor axis -> reshape only, no transpose / extra HBM pass.
    x_rows = x.reshape(M, L)

    # Row tile: sublane-aligned, NOT 128-aligned, so small M is not padded with
    # garbage rows; large tiles amortize the ~0.35us/grid-step overhead.
    sub = _SUBLANE_F32 if jnp.dtype(out_dtype).itemsize >= 4 else 2 * _SUBLANE_F32
    M_sub = _round_up(M, sub)
    TM = min(_round_up(tile_rows, sub), M_sub)
    if TM == M_sub and M_sub >= 2 * sub and (M_sub // 2) % sub == 0:
        TM = M_sub // 2           # >=2 row tiles keeps both v7x TensorCores busy
    M_pad = _round_up(M, TM)
    if M_pad != M:
        x_rows = jnp.pad(x_rows, ((0, M_pad - M), (0, 0)))

    # Column tile of B: full NP when the double-buffered slab fits the VMEM
    # budget, else halve along 128-multiples (v7x has only 64 MiB VMEM).
    if col_tile is None:
        TN = NP
        while (TN > 128 and TN % 2 == 0 and (TN // 2) % 128 == 0
               and 2 * L * TN * B_all.dtype.itemsize > _B_VMEM_BUDGET):
            TN //= 2
    else:
        TN = col_tile
    assert NP % TN == 0 and TN % 128 == 0

    out_rows = pl.pallas_call(
        _static_freq_kernel,
        out_shape=jax.ShapeDtypeStruct((M_pad, NP), out_dtype),
        # Columns innermost: the x block index only depends on i, so each x row
        # tile is DMA'd once per row tile (never re-read per expert / column).
        grid=(M_pad // TM, NP // TN),
        in_specs=[
            pl.BlockSpec((TM, L), lambda i, j: (i, 0)),   # x rows
            pl.BlockSpec((L, TN), lambda i, j: (0, j)),   # B slab (resident when TN==NP)
        ],
        out_specs=pl.BlockSpec((TM, TN), lambda i, j: (i, j)),
        compiler_params=pltpu.CompilerParams(
            dimension_semantics=("parallel", "parallel"),
            vmem_limit_bytes=64 * 1024 * 1024,   # above the ~16/32 MiB scoped default
        ),
    )(x_rows, B_all)

    out = out_rows[:M, :E * L].reshape(N, C, E, L)
    # TODO(synk): if the consumer accepts (N, C, E, L), drop this transpose —
    # it is a full extra HBM pass over the E*N*C*L output outside the kernel.
    return jnp.transpose(out, (0, 2, 1, 3))               # (N, E, C, L)


# --------------------------- pure-JAX reference -------------------------------

def static_freq_reference(x, freq_w, input_len):
    """Direct FFT port of the PyTorch forward (rank_experts=None, windowing=False)."""
    w = freq_w[None, :, None, :]                                   # (1, E, 1, FL)
    X = jnp.fft.rfft(x, axis=-1)                                   # (N, 1, C, FL)
    return jnp.fft.irfft(X * w, n=input_len, axis=-1)              # (N, E, C, L)


# ----------------------------------- main -------------------------------------

if __name__ == "__main__":
    BATCH, CHANNELS, SEQ_LEN, NUM_EXPERTS = 2, 4, 32, 2

    key = jax.random.PRNGKey(0)
    kx, kw = jax.random.split(key)
    x = jax.random.normal(kx, (BATCH, 1, CHANNELS, SEQ_LEN), jnp.float32)
    # nn.Parameter init is ones(1, E, 1, L//2+1); perturb so the test is nontrivial.
    freq_w = 1.0 + 0.1 * jax.random.normal(
        kw, (NUM_EXPERTS, SEQ_LEN // 2 + 1), jnp.float32)

    # One-time parameter fold (setup side, outside the jitted forward).
    B_all = jax.block_until_ready(fold_freq_weight(freq_w, SEQ_LEN))

    out = static_freq_forward(x, B_all, num_experts=NUM_EXPERTS)
    out = jax.block_until_ready(out)

    ref = static_freq_reference(x, freq_w, SEQ_LEN)
    assert out.shape == (BATCH, NUM_EXPERTS, CHANNELS, SEQ_LEN), out.shape
    # bf16 MXU operands with f32 accumulation -> relaxed tolerance.
    max_err = float(jnp.max(jnp.abs(out - ref)))
    assert jnp.allclose(out, ref, rtol=2e-2, atol=2e-2), max_err

    print("KERNEL_OK")
</pallas_src>

<mosaic_0001>
module attributes {stable_mosaic.version = 11 : i64} {
  func.func @_static_freq_kernel(%arg0: i32, %arg1: i32, %arg2: memref<8x32xf32, #tpu.memory_space<vmem>>, %arg3: memref<32x128xbf16, #tpu.memory_space<vmem>>, %arg4: memref<8x128xf32, #tpu.memory_space<vmem>>) attributes {dimension_semantics = [#tpu.dimension_semantics<parallel>, #tpu.dimension_semantics<parallel>], iteration_bounds = array<i64: 1, 1>, scalar_prefetch = 0 : i64, scratch_operands = 0 : i64, tpu.core_type = #tpu.core_type<tc>, window_params = [{transform_indices = @transform_0, window_bounds = array<i64: 8, 32>}, {transform_indices = @transform_1, window_bounds = array<i64: 32, 128>}, {transform_indices = @transform_2, window_bounds = array<i64: 8, 128>}]} {
    %c0 = arith.constant 0 : index
    %c0_0 = arith.constant 0 : index
    %0 = vector.load %arg2[%c0, %c0_0] : memref<8x32xf32, #tpu.memory_space<vmem>>, vector<8x32xf32>
    %1 = arith.truncf %0 : vector<8x32xf32> to vector<8x32xbf16>
    %c0_1 = arith.constant 0 : index
    %c0_2 = arith.constant 0 : index
    %2 = vector.load %arg3[%c0_1, %c0_2] : memref<32x128xbf16, #tpu.memory_space<vmem>>, vector<32x128xbf16>
    %cst = arith.constant dense<0.000000e+00> : vector<8x128xf32>
    %3 = tpu.matmul %1, %2, %cst {dimension_numbers = #tpu.dot_dimension_numbers<[1], [0], [0], [1], [0, 0, 1, 1], [], []>} : vector<8x32xbf16>, vector<32x128xbf16>, vector<8x128xf32> -> vector<8x128xf32>
    %c0_3 = arith.constant 0 : index
    %c0_4 = arith.constant 0 : index
    %4 = vector.load %arg4[%c0_3, %c0_4] : memref<8x128xf32, #tpu.memory_space<vmem>>, vector<8x128xf32>
    tpu.vector_store %arg4[%c0_3, %c0_4], %3 {strides = array<i32>} : memref<8x128xf32, #tpu.memory_space<vmem>>, vector<8x128xf32>,
    return
  }
  func.func @transform_0(%arg0: i32, %arg1: i32) -> (i32, i32) {
    %c0_i32 = arith.constant 0 : i32
    %c0_i32_0 = arith.constant 0 : i32
    return %arg0, %c0_i32 : i32, i32
  }
  func.func @transform_1(%arg0: i32, %arg1: i32) -> (i32, i32) {
    %c0_i32 = arith.constant 0 : i32
    %c0_i32_0 = arith.constant 0 : i32
    return %c0_i32, %arg1 : i32, i32
  }
  func.func @transform_2(%arg0: i32, %arg1: i32) -> (i32, i32) {
    %c0_i32 = arith.constant 0 : i32
    return %arg0, %arg1 : i32, i32
  }
}

</mosaic_0001>

<llo_original>
// kernel: static_freq_forward.1
$region0: #{static_freq_forward.1}
  #allocation0 [shape = 'u32[]', space=smem, size = 0x4, offset = 0x4, fixed_abs, tag = 'smem constant byte address 0x4 - core index']
  #allocation1 [shape = 'u32[72,128]{1,0:T(1,128)}', space=vmem, size = 0x9000, scoped, tag = 'internal scratch']
  %s0 = inlined_call_operand.hbm [shape: f32[8,32], index: 0, kind: input, shape index: {}]
  %s1 = inlined_call_operand.hbm [shape: bf16[32,128], index: 1, kind: input, shape index: {}]
  %s2 = inlined_call_operand.vmem [shape: f32[8,128], index: 2, kind: output, shape index: {}]
  %s3 = sld [smem:[#allocation0]]
  $region26: #{static_freq_forward.1} parent=0
    _
  %s5 = ssub.s32 1, %s3
  %s6 = scalar_select 0, %s5, %s3
  $region1: #{static_freq_forward.1} parent=0
    #allocation2 [shape = 'u8[4096]{0}', space=vmem, size = 0x1000, scoped, tag = 'input window, operand 0, single buffered']
    #allocation3 [shape = 's32[1]{0}', space=sflag, size = 0x4, scoped, tag = 'scoped memory for static_freq_forward.1']
    #allocation4 [shape = 'u8[8192]{0}', space=vmem, size = 0x2000, scoped, tag = 'input window, operand 1, single buffered']
    #allocation5 [shape = 's32[1]{0}', space=sflag, size = 0x4, scoped, tag = 'scoped memory for static_freq_forward.1']
    %7 = vsyncpa [#allocation3], 0
    %8 = vsyncpa [#allocation5], 0
    // Predicated region
    $region2: #{static_freq_forward.1} parent=1 // pred_check
      _
    $region3: #{static_freq_forward.1} parent=1 // pred_check_branch
      %10 = sbr.rel (0) target = $region5
    $region4: #{static_freq_forward.1} parent=1 // pred_region
      %12 = vsyncadd [#allocation3], 0
      %s14 = sshll.u32 %s0, 4
      %s15 = int_to_ptr.hbm [resolvable:$true] %s14
      %s16 = sshll.u32 [#allocation2], 4
      %s17 = int_to_ptr.vmem [resolvable:$true] %s16
      %19 = dma.hbm_to_vmem [thread:$0]  %s15, 128, %s17, [#allocation3]
    $region5: #{static_freq_forward.1} parent=1 // pred_fallthru
      _
    // Predicated region
    $region6: #{static_freq_forward.1} parent=1 // pred_check
      _
    $region7: #{static_freq_forward.1} parent=1 // pred_check_branch
      %21 = sbr.rel (0) target = $region9
    $region8: #{static_freq_forward.1} parent=1 // pred_region
      %23 = vsyncadd [#allocation5], 0
      %s24 = sshll.u32 %s1, 4
      %s25 = int_to_ptr.hbm [resolvable:$true] %s24
      %s26 = sshll.u32 [#allocation4], 4
      %s27 = int_to_ptr.vmem [resolvable:$true] %s26
      %32 = dma.hbm_to_vmem [thread:$0]  %s25, 256, %s27, [#allocation5], 64, 64, 4
    $region9: #{static_freq_forward.1} parent=1 // pred_fallthru
      _
    // Predicated region
    $region10: #{static_freq_forward.1} parent=1 // pred_check
      _
    $region11: #{static_freq_forward.1} parent=1 // pred_check_branch
      %34 = sbr.rel (0) target = $region13
    $region12: #{static_freq_forward.1} parent=1 // pred_region
      %36 = dma.done [#allocation3], 128
    $region13: #{static_freq_forward.1} parent=1 // pred_fallthru
      _
    // Predicated region
    $region14: #{static_freq_forward.1} parent=1 // pred_check
      _
    $region15: #{static_freq_forward.1} parent=1 // pred_check_branch
      %38 = sbr.rel (0) target = $region17
    $region16: #{static_freq_forward.1} parent=1 // pred_region
      %40 = dma.done [#allocation5], 256
    $region17: #{static_freq_forward.1} parent=1 // pred_fallthru
      _
    %v42 = vld [vmem:[#allocation2] sm:$0xff]
    %v43 = vpack.c.bf16 %v42, %v42
    %v44 = vld [vmem:[#allocation4] sm:$0xf]
    %v45 = vld [vmem:[#allocation4 + $0x4] sm:$0xf]
    %v46 = vld [vmem:[#allocation4 + $0x8] sm:$0xf]
    %v47 = vld [vmem:[#allocation4 + $0xc] sm:$0xf]
    %v52 = vunpack.c.l.b16 %v44
    %v53 = vunpack.c.l.b16 %v45
    %v54 = vunpack.c.l.b16 %v46
    %v55 = vunpack.c.l.b16 %v47
    %v56 = vpack.c.b16 %v53, %v52
    %v57 = vpack.c.b16 %v55, %v54
    %vm60 = vcmask 261120
    %v62 = vsel %vm60, %v43, 0
    %64 = vmatpush.bf16.msra.mxu0 0
    %65 = vmatpush.bf16.msra.mxu0 0
    %66 = vmatpush.bf16.msra.mxu0 0
    %67 = vmatpush.bf16.msra.mxu0 0
    %68 = vmatpush.bf16.msra.mxu0 0
    %69 = vmatpush.bf16.msra.mxu0 0
    %70 = vmatpush.bf16.msra.mxu0 %v57
    %71 = vmatpush.bf16.msra.mxu0 %v56
    %72 = vmatmul.bf16.gmra.mxu0 %v62
    %v73 = vpop.f32.mrf.mxu0
    %v74 = vadd.f32 0.0, %v73
    %v75 = vpop.f32.mrf.mxu0
    %76 = vdwg.mxu0
    %77 = vst [vmem:[%s2] sm:$0xff] %v74
    // Predicated region
    $region18: #{static_freq_forward.1} parent=1 // pred_check
      _
    $region19: #{static_freq_forward.1} parent=1 // pred_check_branch
      %79 = sbr.rel (0) target = $region21
    $region20: #{static_freq_forward.1} parent=1 // pred_region
      _
    $region21: #{static_freq_forward.1} parent=1 // pred_fallthru
      _
    // Predicated region
    $region22: #{static_freq_forward.1} parent=1 // pred_check
      _
    $region23: #{static_freq_forward.1} parent=1 // pred_check_branch
      %81 = sbr.rel (0) target = $region25
    $region24: #{static_freq_forward.1} parent=1 // pred_region
      _
    $region25: #{static_freq_forward.1} parent=1 // pred_fallthru
      _
    %82 = vsyncpa [#allocation3], 1
    %83 = vsyncpa [#allocation5], 1

</llo_original>
